<compile_context>
chip_gen: v7x
topology: tpu7x:2x2x1
jax: 0.10.0
libtpu: 0.0.40
codegen_flags: <defaults>
</compile_context>

<pallas_src>
import jax
import jax.numpy as jnp
from jax.experimental import pallas as pl
from jax.experimental.pallas import tpu as pltpu


def _round_up(v, m):
    return ((v + m - 1) // m) * m


def _cdiv(a, b):
    return (a + b - 1) // b


# --------------------------------------------------------------------------
# Stage 1: streaming one-hot segment sum (+ counts) over node tiles.
# --------------------------------------------------------------------------
def _segsum_kernel(nvalid_ref, batch_ref, x_ref, psum_ref, pcnt_ref,
                   acc_ref, cnt_ref):
    c = pl.program_id(0)                 # split (core) index
    n = pl.program_id(1)                 # node-tile index within the split
    n_inner = pl.num_programs(1)
    tile_n = batch_ref.shape[1]
    B_pad = acc_ref.shape[0]

    @pl.when(n == 0)
    def _init():
        acc_ref[...] = jnp.zeros_like(acc_ref)
        cnt_ref[...] = jnp.zeros_like(cnt_ref)

    n_valid = nvalid_ref[0]              # true N (scalar, SMEM)
    offset = (c * n_inner + n) * tile_n  # global row offset of this tile

    # Mask the ragged tail / fully-OOB clamped tiles:
    #   * batch ids -> -1 so they match no graph id,
    #   * x rows -> 0 so unspecified OOB data cannot poison the MXU sum.
    col_ids = jax.lax.broadcasted_iota(jnp.int32, (1, tile_n), 1) + offset
    batch_ids = jnp.where(col_ids < n_valid, batch_ref[...], -1)     # (1, T)
    gid = jax.lax.broadcasted_iota(jnp.int32, (B_pad, tile_n), 0)
    onehot = (gid == batch_ids).astype(jnp.float32)                  # (B, T)

    row_ids = jax.lax.broadcasted_iota(jnp.int32, (tile_n, 1), 0) + offset
    x_tile = jnp.where(row_ids < n_valid, x_ref[...], 0.0)           # (T, F)

    # Segment sum on the MXU; counts on the XLU (overlaps for free).
    acc_ref[...] += jnp.dot(onehot, x_tile,
                            preferred_element_type=jnp.float32)      # (B, F)
    cnt_ref[...] += jnp.sum(onehot, axis=-1, keepdims=True)          # (B, 1)

    @pl.when(n == n_inner - 1)
    def _flush():
        psum_ref[...] = acc_ref[...]
        pcnt_ref[...] = cnt_ref[...]


# --------------------------------------------------------------------------
# Stage 2: combine partials, mean, global_mlp, residual (tiny, one step).
# --------------------------------------------------------------------------
def _mlp_kernel(psum_ref, pcnt_ref, u_ref, w1u_ref, w1x_ref, b1_ref,
                w2_ref, b2_ref, out_ref):
    B_pad = u_ref.shape[0]
    n_splits = psum_ref.shape[0] // B_pad

    seg = psum_ref[pl.ds(0, B_pad), :]
    cnt = pcnt_ref[pl.ds(0, B_pad), :]
    for s in range(1, n_splits):                       # static unroll
        seg = seg + psum_ref[pl.ds(s * B_pad, B_pad), :]
        cnt = cnt + pcnt_ref[pl.ds(s * B_pad, B_pad), :]

    seg_mean = seg / jnp.maximum(cnt, 1.0)             # scatter_mean (0 if empty)
    u = u_ref[...]
    # cat([u, m]) @ W1 == u @ W1[:G_in] + m @ W1[G_in:]   (W1 pre-split)
    pre = (jnp.dot(u, w1u_ref[...], preferred_element_type=jnp.float32)
           + jnp.dot(seg_mean, w1x_ref[...], preferred_element_type=jnp.float32)
           + b1_ref[...])
    h = jnp.maximum(pre, 0.0)                          # ReLU
    out = jnp.dot(h, w2_ref[...], preferred_element_type=jnp.float32) + b2_ref[...]
    out_ref[...] = out + u                             # residual


# --------------------------------------------------------------------------
# Wrappers.
# --------------------------------------------------------------------------
def prepare_global_model_params(params, global_in):
    """One-time parameter prep (keep OFF the hot path): split W1 into the rows
    that multiply u vs. the rows that multiply scatter_mean(x), cast to f32,
    reshape biases to (1, H) / (1, G_out)."""
    w1, b1, w2, b2 = params
    w1 = jnp.asarray(w1, jnp.float32)
    w1u = w1[:global_in, :]
    w1x = w1[global_in:, :]
    b1 = jnp.asarray(b1, jnp.float32).reshape(1, -1)
    w2 = jnp.asarray(w2, jnp.float32)
    b2 = jnp.asarray(b2, jnp.float32).reshape(1, -1)
    return (w1u, w1x, b1, w2, b2)


def global_model_forward(x, edge_index, edge_attr, u, batch, prepped_params,
                         *, tile_n=8192, num_splits=2):
    # edge_index / edge_attr are unused by GlobalModel.forward (API parity).
    del edge_index, edge_attr
    w1u, w1x, b1, w2, b2 = prepped_params
    B, G_in = u.shape
    N, F = x.shape
    G_out = w2.shape[1]
    assert G_out == G_in, "residuals=True requires global_out == global_in"

    # Lane-aligned node tile; only shrinks when the whole graph fits one tile,
    # so large-N callers really do get the big (default 8192) tiles.
    tile_n = _round_up(max(128, min(tile_n, _round_up(N, 128))), 128)
    B_pad = _round_up(B, 8)                      # full sublanes, no masking
    n_tiles = _cdiv(N, tile_n)
    num_splits = max(1, min(num_splits, n_tiles))
    n_inner = _cdiv(n_tiles, num_splits)
    last_tile = n_tiles - 1

    x = jnp.asarray(x, jnp.float32)              # streamed directly, no copy
    batch2d = jnp.asarray(batch, jnp.int32).reshape(1, N)
    u_pad = jnp.pad(jnp.asarray(u, jnp.float32), ((0, B_pad - B), (0, 0)))
    n_scalar = jnp.array([N], jnp.int32)         # scalar-prefetched true N

    def node_block(c, n):
        # Clamp fully-OOB tiles of the last split back to the last real tile;
        # their contribution is masked to zero inside the kernel.
        return jnp.minimum(c * n_inner + n, last_tile)

    psum, pcnt = pl.pallas_call(
        _segsum_kernel,
        out_shape=(jax.ShapeDtypeStruct((num_splits * B_pad, F), jnp.float32),
                   jax.ShapeDtypeStruct((num_splits * B_pad, 1), jnp.float32)),
        grid_spec=pltpu.PrefetchScalarGridSpec(
            num_scalar_prefetch=1,
            grid=(num_splits, n_inner),
            in_specs=[
                pl.BlockSpec((1, tile_n), lambda c, n, nv: (0, node_block(c, n))),
                pl.BlockSpec((tile_n, F), lambda c, n, nv: (node_block(c, n), 0)),
            ],
            out_specs=[
                pl.BlockSpec((B_pad, F), lambda c, n, nv: (c, 0)),
                pl.BlockSpec((B_pad, 1), lambda c, n, nv: (c, 0)),
            ],
            scratch_shapes=[pltpu.VMEM((B_pad, F), jnp.float32),
                            pltpu.VMEM((B_pad, 1), jnp.float32)]),
        compiler_params=pltpu.CompilerParams(
            dimension_semantics=("parallel", "arbitrary"),
            vmem_limit_bytes=32 * 1024 * 1024),   # safe on v5e/v6e/v7x
    )(n_scalar, batch2d, x)

    out = pl.pallas_call(
        _mlp_kernel,
        out_shape=jax.ShapeDtypeStruct((B_pad, G_out), jnp.float32),
    )(psum, pcnt, u_pad, w1u, w1x, b1, w2, b2)
    return out[:B]


def _reference(x, u, batch, params):
    w1, b1, w2, b2 = params
    B = u.shape[0]
    onehot = (jnp.arange(B)[:, None] == batch[None, :]).astype(jnp.float32)
    seg_sum = onehot @ x
    counts = jnp.maximum(onehot.sum(-1, keepdims=True), 1.0)
    seg_mean = seg_sum / counts
    h = jnp.concatenate([u, seg_mean], axis=1)
    h = jnp.maximum(h @ w1 + b1, 0.0)
    return h @ w2 + b2 + u


if __name__ == "__main__":
    key = jax.random.PRNGKey(0)

    # Shapes consistent with the module: node_out=8 (x feature dim fed to the
    # global block), global_in=global_out=4 (residual requires equal),
    # hid_channels=32.
    F_node, G_in, G_out, H = 8, 4, 4, 32
    k_w1, k_b1, k_w2, k_b2, k_x1, k_u1, k_x2, k_u2 = jax.random.split(key, 8)
    w1 = jax.random.normal(k_w1, (G_in + F_node, H), jnp.float32) * 0.1
    b1 = jax.random.normal(k_b1, (H,), jnp.float32) * 0.1
    w2 = jax.random.normal(k_w2, (H, G_out), jnp.float32) * 0.1
    b2 = jax.random.normal(k_b2, (G_out,), jnp.float32) * 0.1
    params = (w1, b1, w2, b2)
    prepped = prepare_global_model_params(params, G_in)   # one-time prep

    edge_index = jnp.zeros((2, 1), jnp.int32)   # unused by this block
    edge_attr = jnp.zeros((1, 1), jnp.float32)

    # ---- test 1: tiny graph batch (N=16 nodes over B=2 graphs), one tile ----
    N1, B1 = 16, 2
    x1 = jax.random.normal(k_x1, (N1, F_node), jnp.float32)
    u1 = jax.random.normal(k_u1, (B1, G_in), jnp.float32)
    batch1 = jnp.concatenate([jnp.zeros(10, jnp.int32), jnp.ones(6, jnp.int32)])
    out1 = jax.block_until_ready(
        global_model_forward(x1, edge_index, edge_attr, u1, batch1, prepped))
    ref1 = _reference(x1, u1, batch1, params)
    assert out1.shape == (B1, G_out)
    assert jnp.allclose(out1, ref1, atol=1e-4, rtol=1e-4), (out1, ref1)

    # ---- test 2: ragged multi-tile path + 2-way (TensorCore) split ----
    N2, B2 = 300, 3
    x2 = jax.random.normal(k_x2, (N2, F_node), jnp.float32)
    u2 = jax.random.normal(k_u2, (B2, G_in), jnp.float32)
    batch2 = jnp.concatenate([jnp.full(120, 0, jnp.int32),
                              jnp.full(100, 1, jnp.int32),
                              jnp.full(80, 2, jnp.int32)])
    out2 = jax.block_until_ready(
        global_model_forward(x2, edge_index, edge_attr, u2, batch2, prepped,
                             tile_n=128, num_splits=2))
    ref2 = _reference(x2, u2, batch2, params)
    assert out2.shape == (B2, G_out)
    assert jnp.allclose(out2, ref2, atol=1e-4, rtol=1e-4), (out2, ref2)

    print("KERNEL_OK")
</pallas_src>

<mosaic_0001>
module attributes {stable_mosaic.version = 11 : i64} {
  func.func @_segsum_kernel(%arg0: i32, %arg1: i32, %arg2: memref<1xi32, #tpu.memory_space<smem>>, %arg3: memref<1x128xi32, #tpu.memory_space<vmem>>, %arg4: memref<128x8xf32, #tpu.memory_space<vmem>>, %arg5: memref<8x8xf32, #tpu.memory_space<vmem>>, %arg6: memref<8x1xf32, #tpu.memory_space<vmem>>, %arg7: memref<8x8xf32, #tpu.memory_space<vmem>>, %arg8: memref<8x1xf32, #tpu.memory_space<vmem>>) attributes {dimension_semantics = [#tpu.dimension_semantics<parallel>, #tpu.dimension_semantics<arbitrary>], iteration_bounds = array<i64: 1, 1>, scalar_prefetch = 1 : i64, scratch_operands = 2 : i64, tpu.core_type = #tpu.core_type<tc>, window_params = [{transform_indices = @transform_0, window_bounds = array<i64: 1, 128>}, {transform_indices = @transform_1, window_bounds = array<i64: 128, 8>}, {transform_indices = @transform_2, window_bounds = array<i64: 8, 8>}, {transform_indices = @transform_3, window_bounds = array<i64: 8, 1>}]} {
    %c0_i32 = arith.constant 0 : i32
    %0 = arith.cmpi eq, %arg1, %c0_i32 : i32
    %1 = arith.extui %0 : i1 to i32
    %c0_i32_0 = arith.constant 0 : i32
    %2 = arith.cmpi ne, %1, %c0_i32_0 : i32
    scf.if %2 {
      %cst_17 = arith.constant 0.000000e+00 : f32
      %42 = vector.broadcast %cst_17 : f32 to vector<8x8xf32>
      %c0_18 = arith.constant 0 : index
      %c0_19 = arith.constant 0 : index
      %43 = vector.load %arg7[%c0_18, %c0_19] : memref<8x8xf32, #tpu.memory_space<vmem>>, vector<8x8xf32>
      tpu.vector_store %arg7[%c0_18, %c0_19], %42 {strides = array<i32>} : memref<8x8xf32, #tpu.memory_space<vmem>>, vector<8x8xf32>,
      %cst_20 = arith.constant 0.000000e+00 : f32
      %44 = vector.broadcast %cst_20 : f32 to vector<8x1xf32>
      %c0_21 = arith.constant 0 : index
      %c0_22 = arith.constant 0 : index
      %45 = vector.load %arg8[%c0_21, %c0_22] : memref<8x1xf32, #tpu.memory_space<vmem>>, vector<8x1xf32>
      tpu.vector_store %arg8[%c0_21, %c0_22], %44 {strides = array<i32>} : memref<8x1xf32, #tpu.memory_space<vmem>>, vector<8x1xf32>,
    } else {
    }
    %c0 = arith.constant 0 : index
    %3 = memref.load %arg2[%c0] : memref<1xi32, #tpu.memory_space<smem>>
    %c1_i32 = arith.constant 1 : i32
    %4 = arith.muli %arg0, %c1_i32 : i32
    %5 = arith.addi %4, %arg1 : i32
    %c128_i32 = arith.constant 128 : i32
    %6 = arith.muli %5, %c128_i32 : i32
    %7 = tpu.iota {dimensions = array<i32: 1>} : vector<1x128xi32>
    %8 = vector.broadcast %6 : i32 to vector<1x128xi32>
    %9 = arith.addi %7, %8 : vector<1x128xi32>
    %10 = vector.broadcast %3 : i32 to vector<1x128xi32>
    %11 = arith.cmpi slt, %9, %10 : vector<1x128xi32>
    %c0_1 = arith.constant 0 : index
    %c0_2 = arith.constant 0 : index
    %12 = vector.load %arg3[%c0_1, %c0_2] : memref<1x128xi32, #tpu.memory_space<vmem>>, vector<1x128xi32>
    %c-1_i32 = arith.constant -1 : i32
    %13 = vector.broadcast %c-1_i32 : i32 to vector<1x128xi32>
    %14 = arith.select %11, %12, %13 : vector<1x128xi1>, vector<1x128xi32>
    %15 = tpu.iota {dimensions = array<i32: 0>} : vector<8x128xi32>
    %16 = vector.broadcast %14 : vector<1x128xi32> to vector<8x128xi32>
    %17 = arith.cmpi eq, %15, %16 : vector<8x128xi32>
    %18 = arith.extui %17 : vector<8x128xi1> to vector<8x128xi32>
    %19 = arith.sitofp %18 : vector<8x128xi32> to vector<8x128xf32>
    %20 = tpu.iota {dimensions = array<i32: 0>} : vector<128x1xi32>
    %21 = vector.broadcast %6 : i32 to vector<128x1xi32>
    %22 = arith.addi %20, %21 : vector<128x1xi32>
    %23 = vector.broadcast %3 : i32 to vector<128x1xi32>
    %24 = arith.cmpi slt, %22, %23 : vector<128x1xi32>
    %c0_3 = arith.constant 0 : index
    %c0_4 = arith.constant 0 : index
    %25 = vector.load %arg4[%c0_3, %c0_4] : memref<128x8xf32, #tpu.memory_space<vmem>>, vector<128x8xf32>
    %cst = arith.constant 0.000000e+00 : f32
    %26 = vector.shape_cast %24 : vector<128x1xi1> to vector<128x1xi1>
    %27 = vector.broadcast %26 : vector<128x1xi1> to vector<128x8xi1>
    %28 = vector.broadcast %cst : f32 to vector<128x8xf32>
    %29 = arith.select %27, %25, %28 : vector<128x8xi1>, vector<128x8xf32>
    %c0_5 = arith.constant 0 : index
    %c0_6 = arith.constant 0 : index
    %30 = vector.load %arg7[%c0_5, %c0_6] : memref<8x8xf32, #tpu.memory_space<vmem>>, vector<8x8xf32>
    %cst_7 = arith.constant dense<0.000000e+00> : vector<8x8xf32>
    %31 = tpu.matmul %19, %29, %cst_7 {dimension_numbers = #tpu.dot_dimension_numbers<[1], [0], [0], [1], [0, 0, 1, 1], [], []>} : vector<8x128xf32>, vector<128x8xf32>, vector<8x8xf32> -> vector<8x8xf32>
    %32 = arith.addf %30, %31 : vector<8x8xf32>
    %c0_8 = arith.constant 0 : index
    %c0_9 = arith.constant 0 : index
    %33 = vector.load %arg7[%c0_8, %c0_9] : memref<8x8xf32, #tpu.memory_space<vmem>>, vector<8x8xf32>
    tpu.vector_store %arg7[%c0_8, %c0_9], %32 {strides = array<i32>} : memref<8x8xf32, #tpu.memory_space<vmem>>, vector<8x8xf32>,
    %c0_10 = arith.constant 0 : index
    %c0_11 = arith.constant 0 : index
    %34 = vector.load %arg8[%c0_10, %c0_11] : memref<8x1xf32, #tpu.memory_space<vmem>>, vector<8x1xf32>
    %cst_12 = arith.constant dense<0.000000e+00> : vector<8xf32>
    %35 = vector.multi_reduction <add>, %19, %cst_12 [1] : vector<8x128xf32> to vector<8xf32>
    %36 = vector.shape_cast %35 : vector<8xf32> to vector<8x1xf32>
    %37 = arith.addf %34, %36 : vector<8x1xf32>
    %c0_13 = arith.constant 0 : index
    %c0_14 = arith.constant 0 : index
    %38 = vector.load %arg8[%c0_13, %c0_14] : memref<8x1xf32, #tpu.memory_space<vmem>>, vector<8x1xf32>
    tpu.vector_store %arg8[%c0_13, %c0_14], %37 {strides = array<i32>} : memref<8x1xf32, #tpu.memory_space<vmem>>, vector<8x1xf32>,
    %c0_i32_15 = arith.constant 0 : i32
    %39 = arith.cmpi eq, %arg1, %c0_i32_15 : i32
    %40 = arith.extui %39 : i1 to i32
    %c0_i32_16 = arith.constant 0 : i32
    %41 = arith.cmpi ne, %40, %c0_i32_16 : i32
    scf.if %41 {
      %c0_17 = arith.constant 0 : index
      %c0_18 = arith.constant 0 : index
      %42 = vector.load %arg7[%c0_17, %c0_18] : memref<8x8xf32, #tpu.memory_space<vmem>>, vector<8x8xf32>
      %c0_19 = arith.constant 0 : index
      %c0_20 = arith.constant 0 : index
      %43 = vector.load %arg5[%c0_19, %c0_20] : memref<8x8xf32, #tpu.memory_space<vmem>>, vector<8x8xf32>
      tpu.vector_store %arg5[%c0_19, %c0_20], %42 {strides = array<i32>} : memref<8x8xf32, #tpu.memory_space<vmem>>, vector<8x8xf32>,
      %c0_21 = arith.constant 0 : index
      %c0_22 = arith.constant 0 : index
      %44 = vector.load %arg8[%c0_21, %c0_22] : memref<8x1xf32, #tpu.memory_space<vmem>>, vector<8x1xf32>
      %c0_23 = arith.constant 0 : index
      %c0_24 = arith.constant 0 : index
      %45 = vector.load %arg6[%c0_23, %c0_24] : memref<8x1xf32, #tpu.memory_space<vmem>>, vector<8x1xf32>
      tpu.vector_store %arg6[%c0_23, %c0_24], %44 {strides = array<i32>} : memref<8x1xf32, #tpu.memory_space<vmem>>, vector<8x1xf32>,
    } else {
    }
    return
  }
  func.func @transform_0(%arg0: i32, %arg1: i32, %arg2: memref<1xi32, #tpu.memory_space<smem>>) -> (i32, i32) {
    %c1_i32 = arith.constant 1 : i32
    %0 = arith.muli %arg0, %c1_i32 : i32
    %1 = arith.addi %0, %arg1 : i32
    %c0_i32 = arith.constant 0 : i32
    %2 = arith.minsi %1, %c0_i32 : i32
    %c0_i32_0 = arith.constant 0 : i32
    %c0_i32_1 = arith.constant 0 : i32
    return %c0_i32_0, %2 : i32, i32
  }
  func.func @transform_1(%arg0: i32, %arg1: i32, %arg2: memref<1xi32, #tpu.memory_space<smem>>) -> (i32, i32) {
    %c1_i32 = arith.constant 1 : i32
    %0 = arith.muli %arg0, %c1_i32 : i32
    %1 = arith.addi %0, %arg1 : i32
    %c0_i32 = arith.constant 0 : i32
    %2 = arith.minsi %1, %c0_i32 : i32
    %c0_i32_0 = arith.constant 0 : i32
    %c0_i32_1 = arith.constant 0 : i32
    return %2, %c0_i32_0 : i32, i32
  }
  func.func @transform_2(%arg0: i32, %arg1: i32, %arg2: memref<1xi32, #tpu.memory_space<smem>>) -> (i32, i32) {
    %c0_i32 = arith.constant 0 : i32
    %c0_i32_0 = arith.constant 0 : i32
    return %arg0, %c0_i32 : i32, i32
  }
  func.func @transform_3(%arg0: i32, %arg1: i32, %arg2: memref<1xi32, #tpu.memory_space<smem>>) -> (i32, i32) {
    %c0_i32 = arith.constant 0 : i32
    %c0_i32_0 = arith.constant 0 : i32
    return %arg0, %c0_i32 : i32, i32
  }
}

</mosaic_0001>

<llo_original>
// kernel: tpu_custom_call.1
$region0: #{tpu_custom_call.1}
  #allocation0 [shape = 'u32[]', space=smem, size = 0x4, offset = 0x4, fixed_abs, tag = 'smem constant byte address 0x4 - core index']
  #allocation1 [shape = 'u32[144,128]{1,0:T(1,128)}', space=vmem, size = 0x12000, scoped, tag = 'internal scratch']
  #allocation2 [shape = 'f32[8,8]{1,0:T(8,128)}', space=vmem, size = 0x1000, scoped, tag = 'scratch operand']
  #allocation3 [shape = 'f32[8,1]{1,0:T(8,128)}', space=vmem, size = 0x1000, scoped, tag = 'scratch operand']
  #allocation4 [shape = 's32[1]{0}', space=sflag, size = 0x4, scoped, tag = 'scoped memory for tpu_custom_call.1']
  #allocation5 [shape = 's32[1]{0:T(128)S(6)}', space=smem, size = 0x200, scoped, tag = 'prefetched SMEM operand 0']
  %s0 = inlined_call_operand.<no memory space> [shape: s32[1], index: 0, kind: input, shape index: {}]
  %s1 = inlined_call_operand.vmem [shape: s32[1,16], index: 1, kind: input, shape index: {}]
  %s2 = inlined_call_operand.vmem [shape: f32[16,8], index: 2, kind: input, shape index: {}]
  %s3 = inlined_call_operand.hbm [shape: f32[8,8], index: 3, kind: output, shape index: {0}]
  %s4 = inlined_call_operand.vmem [shape: f32[8,1], index: 4, kind: output, shape index: {1}]
  %5 = xla_tuple %s3, %s4
  %s6 = sld [smem:[#allocation0]]
  $region34: #{tpu_custom_call.1} parent=0
    _
  %s8 = ssub.s32 1, %s6
  %s9 = scalar_select 0, %s8, %s6
  %10 = sst [smem:[#allocation5]] %s0
  $region1: #{tpu_custom_call.1} parent=0
    #allocation6 [shape = 'u8[4096]{0}', space=vmem, size = 0x1000, scoped, tag = 'output window, operand 0, single buffered']
    #allocation7 [shape = 's32[1]{0}', space=sflag, size = 0x4, scoped, tag = 'scoped memory for tpu_custom_call.1']
    %11 = vsyncpa [#allocation7], 0
    // Predicated region
    $region2: #{tpu_custom_call.1} parent=1 // pred_check
      _
    $region3: #{tpu_custom_call.1} parent=1 // pred_check_branch
      %13 = sbr.rel (0) target = $region5
    $region4: #{tpu_custom_call.1} parent=1 // pred_region
      %s14 = sadd.s32 0, 0
      %p15 = scmp.lt.s32.totalorder %s14, 0
      %s16 = scalar_select %p15, %s14, 0
      %p17 = scmp.lt.s32.totalorder %s16, 0
      %s18 = scalar_select %p17, %s16, 0
      %s19 = scalar_lea.vmem %s1, %s18
      %s20 = sadd.s32 0, 0
      %p21 = scmp.lt.s32.totalorder %s20, 0
      %s22 = scalar_select %p21, %s20, 0
    $region5: #{tpu_custom_call.1} parent=1 // pred_fallthru
      _
    // Predicated region
    $region6: #{tpu_custom_call.1} parent=1 // pred_check
      _
    $region7: #{tpu_custom_call.1} parent=1 // pred_check_branch
      %24 = sbr.rel (0) target = $region9
    $region8: #{tpu_custom_call.1} parent=1 // pred_region
      %s25 = sadd.s32 0, 0
      %p26 = scmp.lt.s32.totalorder %s25, 0
      %s27 = scalar_select %p26, %s25, 0
      %s28 = smul.u32 16, %s27
      %s29 = ssub.s32 2, %s28
      %s30 = smul.u32 128, %s29
      %p31 = scmp.lt.s32.totalorder %s28, 1
      %s32 = scalar_select %p31, %s28, 1
      %s33 = smul.addr %s32, 8
      %s34 = scalar_lea.vmem %s2, %s33
      %s35 = sadd.s32 0, 0
      %p36 = scmp.lt.s32.totalorder %s35, 0
      %s37 = scalar_select %p36, %s35, 0
      %s38 = smul.u32 16, %s37
      %s39 = ssub.s32 2, %s38
      %s40 = smul.u32 128, %s39
    $region9: #{tpu_custom_call.1} parent=1 // pred_fallthru
      _
    %s41 = sadd.s32 0, 0
    %p42 = scmp.lt.s32.totalorder %s41, 0
    %s43 = scalar_select %p42, %s41, 0
    %p44 = scmp.lt.s32.totalorder %s43, 0
    %s45 = scalar_select %p44, %s43, 0
    %s46 = scalar_lea.vmem %s1, %s45
    %s47 = sadd.s32 0, 0
    %p48 = scmp.lt.s32.totalorder %s47, 0
    %s49 = scalar_select %p48, %s47, 0
    %s50 = smul.u32 16, %s49
    %s51 = ssub.s32 2, %s50
    %s52 = smul.u32 128, %s51
    %p53 = scmp.lt.s32.totalorder %s50, 1
    %s54 = scalar_select %p53, %s50, 1
    %s55 = smul.addr %s54, 8
    %s56 = scalar_lea.vmem %s2, %s55
    %s57 = sadd.s32 0, 0
    %p58 = scmp.lt.s32.totalorder %s57, 0
    %s59 = scalar_select %p58, %s57, 0
    %p60 = scmp.lt.s32.totalorder %s59, 0
    %s61 = scalar_select %p60, %s59, 0
    %s62 = scalar_lea.vmem %s1, %s61
    %s63 = sadd.s32 0, 0
    %p64 = scmp.lt.s32.totalorder %s63, 0
    %s65 = scalar_select %p64, %s63, 0
    %s66 = sadd.s32 0, 0
    %p67 = scmp.lt.s32.totalorder %s66, 0
    %s68 = scalar_select %p67, %s66, 0
    %s69 = smul.u32 16, %s68
    %s70 = ssub.s32 2, %s69
    %s71 = smul.u32 128, %s70
    %p72 = scmp.lt.s32.totalorder %s69, 1
    %s73 = scalar_select %p72, %s69, 1
    %s74 = smul.addr %s73, 8
    %s75 = scalar_lea.vmem %s2, %s74
    %s76 = sadd.s32 0, 0
    %p77 = scmp.lt.s32.totalorder %s76, 0
    %s78 = scalar_select %p77, %s76, 0
    %s79 = smul.u32 16, %s78
    %s80 = ssub.s32 2, %s79
    %s81 = smul.u32 128, %s80
    %p82 = scmp.eq.s32.totalorder 0, 0
    // Predicated region
    $region10: #{tpu_custom_call.1} parent=1 // pred_check
      %p83 = pneg %p82
    $region11: #{tpu_custom_call.1} parent=1 // pred_check_branch
      %85 = sbr.rel (%p83) target = $region13
    $region12: #{tpu_custom_call.1} parent=1 // pred_region
      %vm86 = vcmask 64512
      %87 = vst.msk [vmem:[#allocation2] sm:$0xff] %vm86, 0.0
      %vm88 = vcmask 7168
      %89 = vst.msk [vmem:[#allocation3] sm:$0xff] %vm88, 0.0
    $region13: #{tpu_custom_call.1} parent=1 // pred_fallthru
      _
    %s90 = sld [smem:[#allocation5]]
    %s91 = sadd.s32 0, 0
    %s92 = smul.u32 %s91, 128
    %v93 = vlaneseq
    %v94 = vand.u32 %v93, 127
    %v95 = vstv %s92
    %v96 = vadd.s32 %v94, %v95
    %v97 = vstv %s90
    %vm98 = vcmp.lt.s32.totalorder %v96, %v97
    %v99 = vld [vmem:[%s62] sm:$0x1]
    %v100 = vsel %vm98, %v99, 4294967295
    %v101 = vlaneseq
    %v102 = vshrl.u32 %v101, 7
    %v103 = vlaneseq
    %v104 = vshrl.u32 %v103, 7
    %v105 = vsub.s32 0, %v104
    %v106 = vrot.slane %v100, %v105
    %vm107 = vcmp.eq.s32.totalorder %v102, %v106
    %v108 = vsel %vm107, 1, 0
    %v109 = vcvt.s32.f32 %v108
    %v110 = vadd.s32 %v102, 8
    %v111 = vadd.s32 %v102, 16
    %v112 = vadd.s32 %v102, 24
    %v113 = vadd.s32 %v102, 32
    %v114 = vadd.s32 %v102, 40
    %v115 = vadd.s32 %v102, 48
    %v116 = vadd.s32 %v102, 56
    %v117 = vadd.s32 %v102, 64
    %v118 = vadd.s32 %v102, 72
    %v119 = vadd.s32 %v102, 80
    %v120 = vadd.s32 %v102, 88
    %v121 = vadd.s32 %v102, 96
    %v122 = vadd.s32 %v102, 104
    %v123 = vadd.s32 %v102, 112
    %v124 = vadd.s32 %v102, 120
    %v125 = vadd.s32 %v102, %v95
    %v126 = vadd.s32 %v110, %v95
    %v127 = vadd.s32 %v111, %v95
    %v128 = vadd.s32 %v112, %v95
    %v129 = vadd.s32 %v113, %v95
    %v130 = vadd.s32 %v114, %v95
    %v131 = vadd.s32 %v115, %v95
    %v132 = vadd.s32 %v116, %v95
    %v133 = vadd.s32 %v117, %v95
    %v134 = vadd.s32 %v118, %v95
    %v135 = vadd.s32 %v119, %v95
    %v136 = vadd.s32 %v120, %v95
    %v137 = vadd.s32 %v121, %v95
    %v138 = vadd.s32 %v122, %v95
    %v139 = vadd.s32 %v123, %v95
    %v140 = vadd.s32 %v124, %v95
    %vm141 = vcmp.lt.s32.totalorder %v125, %v97
    %vm142 = vcmp.lt.s32.totalorder %v126, %v97
    %vm143 = vcmp.lt.s32.totalorder %v127, %v97
    %vm144 = vcmp.lt.s32.totalorder %v128, %v97
    %vm145 = vcmp.lt.s32.totalorder %v129, %v97
    %vm146 = vcmp.lt.s32.totalorder %v130, %v97
    %vm147 = vcmp.lt.s32.totalorder %v131, %v97
    %vm148 = vcmp.lt.s32.totalorder %v132, %v97
    %vm149 = vcmp.lt.s32.totalorder %v133, %v97
    %vm150 = vcmp.lt.s32.totalorder %v134, %v97
    %vm151 = vcmp.lt.s32.totalorder %v135, %v97
    %vm152 = vcmp.lt.s32.totalorder %v136, %v97
    %vm153 = vcmp.lt.s32.totalorder %v137, %v97
    %vm154 = vcmp.lt.s32.totalorder %v138, %v97
    %vm155 = vcmp.lt.s32.totalorder %v139, %v97
    %vm156 = vcmp.lt.s32.totalorder %v140, %v97
    %v157 = vld [vmem:[%s75] sm:$0xff]
    %v158 = vld [vmem:[%s75 + $0x8] sm:$0xff]
    %v159 = vld [vmem:[%s75 + $0x10] sm:$0xff]
    %v160 = vld [vmem:[%s75 + $0x18] sm:$0xff]
    %v161 = vld [vmem:[%s75 + $0x20] sm:$0xff]
    %v162 = vld [vmem:[%s75 + $0x28] sm:$0xff]
    %v163 = vld [vmem:[%s75 + $0x30] sm:$0xff]
    %v164 = vld [vmem:[%s75 + $0x38] sm:$0xff]
    %v165 = vld [vmem:[%s75 + $0x40] sm:$0xff]
    %v166 = vld [vmem:[%s75 + $0x48] sm:$0xff]
    %v167 = vld [vmem:[%s75 + $0x50] sm:$0xff]
    %v168 = vld [vmem:[%s75 + $0x58] sm:$0xff]
    %v169 = vld [vmem:[%s75 + $0x60] sm:$0xff]
    %v170 = vld [vmem:[%s75 + $0x68] sm:$0xff]
    %v171 = vld [vmem:[%s75 + $0x70] sm:$0xff]
    %v172 = vld [vmem:[%s75 + $0x78] sm:$0xff]
    %v173 = vsel %vm141, 1, 0
    %v174 = vsel %vm142, 1, 0
    %v175 = vsel %vm143, 1, 0
    %v176 = vsel %vm144, 1, 0
    %v177 = vsel %vm145, 1, 0
    %v178 = vsel %vm146, 1, 0
    %v179 = vsel %vm147, 1, 0
    %v180 = vsel %vm148, 1, 0
    %v181 = vsel %vm149, 1, 0
    %v182 = vsel %vm150, 1, 0
    %v183 = vsel %vm151, 1, 0
    %v184 = vsel %vm152, 1, 0
    %v185 = vsel %vm153, 1, 0
    %v186 = vsel %vm154, 1, 0
    %v187 = vsel %vm155, 1, 0
    %v188 = vsel %vm156, 1, 0
    %vm189 = vcmp.eq.s32.totalorder %v173, 1
    %vm190 = vcmp.eq.s32.totalorder %v174, 1
    %vm191 = vcmp.eq.s32.totalorder %v175, 1
    %vm192 = vcmp.eq.s32.totalorder %v176, 1
    %vm193 = vcmp.eq.s32.totalorder %v177, 1
    %vm194 = vcmp.eq.s32.totalorder %v178, 1
    %vm195 = vcmp.eq.s32.totalorder %v179, 1
    %vm196 = vcmp.eq.s32.totalorder %v180, 1
    %vm197 = vcmp.eq.s32.totalorder %v181, 1
    %vm198 = vcmp.eq.s32.totalorder %v182, 1
    %vm199 = vcmp.eq.s32.totalorder %v183, 1
    %vm200 = vcmp.eq.s32.totalorder %v184, 1
    %vm201 = vcmp.eq.s32.totalorder %v185, 1
    %vm202 = vcmp.eq.s32.totalorder %v186, 1
    %vm203 = vcmp.eq.s32.totalorder %v187, 1
    %vm204 = vcmp.eq.s32.totalorder %v188, 1
    %v205 = vsel %vm189, %v157, 0.0
    %v206 = vsel %vm190, %v158, 0.0
    %v207 = vsel %vm191, %v159, 0.0
    %v208 = vsel %vm192, %v160, 0.0
    %v209 = vsel %vm193, %v161, 0.0
    %v210 = vsel %vm194, %v162, 0.0
    %v211 = vsel %vm195, %v163, 0.0
    %v212 = vsel %vm196, %v164, 0.0
    %v213 = vsel %vm197, %v165, 0.0
    %v214 = vsel %vm198, %v166, 0.0
    %v215 = vsel %vm199, %v167, 0.0
    %v216 = vsel %vm200, %v168, 0.0
    %v217 = vsel %vm201, %v169, 0.0
    %v218 = vsel %vm202, %v170, 0.0
    %v219 = vsel %vm203, %v171, 0.0
    %v220 = vsel %vm204, %v172, 0.0
    %v221 = vld [vmem:[#allocation2] sm:$0xff]
    %222 = vmatprep.subr.mxu0 0.0
    %223 = vmatpush1.msra.mxu0 %v205
    %224 = vmatprep.subr.mxu0 0.0
    %225 = vmatpush1.msra.mxu0 %v206
    %226 = vmatprep.subr.mxu0 0.0
    %227 = vmatpush1.msra.mxu0 %v207
    %228 = vmatprep.subr.mxu0 0.0
    %229 = vmatpush1.msra.mxu0 %v208
    %230 = vmatprep.subr.mxu0 0.0
    %231 = vmatpush1.msra.mxu0 %v209
    %232 = vmatprep.subr.mxu0 0.0
    %233 = vmatpush1.msra.mxu0 %v210
    %234 = vmatprep.subr.mxu0 0.0
    %235 = vmatpush1.msra.mxu0 %v211
    %236 = vmatprep.subr.mxu0 0.0
    %237 = vmatpush1.msra.mxu0 %v212
    %238 = vmatprep.subr.mxu0 0.0
    %239 = vmatpush1.msra.mxu0 %v213
    %240 = vmatprep.subr.mxu0 0.0
    %241 = vmatpush1.msra.mxu0 %v214
    %242 = vmatprep.subr.mxu0 0.0
    %243 = vmatpush1.msra.mxu0 %v215
    %244 = vmatprep.subr.mxu0 0.0
    %245 = vmatpush1.msra.mxu0 %v216
    %246 = vmatprep.subr.mxu0 0.0
    %247 = vmatpush1.msra.mxu0 %v217
    %248 = vmatprep.subr.mxu0 0.0
    %249 = vmatpush1.msra.mxu0 %v218
    %250 = vmatprep.subr.mxu0 0.0
    %251 = vmatpush1.msra.mxu0 %v219
    %252 = vmatprep.subr.mxu0 0.0
    %253 = vmatpush1.msra.mxu0 %v220
    %254 = vmatprep.subr.mxu0 0.0
    %255 = vmatpush1.msra.mxu0 0.0
    %256 = vmatprep.subr.mxu0 0.0
    %257 = vmatpush1.msra.mxu0 0.0
    %258 = vmatprep.subr.mxu0 0.0
    %259 = vmatpush1.msra.mxu0 0.0
    %260 = vmatprep.subr.mxu0 0.0
    %261 = vmatpush1.msra.mxu0 0.0
    %262 = vmatprep.subr.mxu0 0.0
    %263 = vmatpush1.msra.mxu0 0.0
    %264 = vmatprep.subr.mxu0 0.0
    %265 = vmatpush1.msra.mxu0 0.0
    %266 = vmatprep.subr.mxu0 0.0
    %267 = vmatpush1.msra.mxu0 0.0
    %268 = vmatprep.subr.mxu0 0.0
    %269 = vmatpush1.msra.mxu0 0.0
    %270 = vmatprep.subr.mxu0 0.0
    %271 = vmatpush1.msra.mxu0 0.0
    %272 = vmatprep.subr.mxu0 0.0
    %273 = vmatpush1.msra.mxu0 0.0
    %274 = vmatprep.subr.mxu0 0.0
    %275 = vmatpush1.msra.mxu0 0.0
    %276 = vmatprep.subr.mxu0 0.0
    %277 = vmatpush1.msra.mxu0 0.0
    %278 = vmatprep.subr.mxu0 0.0
    %279 = vmatpush1.msra.mxu0 0.0
    %280 = vmatprep.subr.mxu0 0.0
    %281 = vmatpush1.msra.mxu0 0.0
    %282 = vmatprep.subr.mxu0 0.0
    %283 = vmatpush1.msra.mxu0 0.0
    %284 = vmatprep.subr.mxu0 0.0
    %285 = vmatpush1.msra.mxu0 0.0
    %286 = vmatprep.mubr.f32.mxu0 0.0
    %287 = vmatmul.mubr.f32.gmra.mrb[0].mxu0 %v109
    %v288 = vpop.f32.mrb[0].mxu0
    %v289 = vadd.f32 0.0, %v288
    %v290 = vpop.f32.mrb[0].mxu0
    %291 = vdwg.mxu0
    %v292 = vadd.f32 %v221, %v289
    %vm293 = vcmask 64512
    %294 = vst.msk [vmem:[#allocation2] sm:$0xff] %vm293, %v292
    %v295 = vld [vmem:[#allocation3] sm:$0xff]
    %296 = vadd.xlane.f32.xlu0 %v109
    %v297 = vpop.xlane.xlu0 %296
    %v298 = vadd.f32 %v295, %v297
    %vm299 = vcmask 7168
    %300 = vst.msk [vmem:[#allocation3] sm:$0xff] %vm299, %v298
    // Predicated region
    $region14: #{tpu_custom_call.1} parent=1 // pred_check
      %p301 = pneg %p82
    $region15: #{tpu_custom_call.1} parent=1 // pred_check_branch
      %303 = sbr.rel (%p301) target = $region17
    $region16: #{tpu_custom_call.1} parent=1 // pred_region
      %v304 = vld [vmem:[#allocation2] sm:$0xff]
      %305 = vst.msk [vmem:[#allocation6] sm:$0xff] %vm293, %v304
      %v306 = vld [vmem:[#allocation3] sm:$0xff]
      %307 = vst.msk [vmem:[%s4] sm:$0xff] %vm299, %v306
    $region17: #{tpu_custom_call.1} parent=1 // pred_fallthru
      _
    // Predicated region
    $region18: #{tpu_custom_call.1} parent=1 // pred_check
      _
    $region19: #{tpu_custom_call.1} parent=1 // pred_check_branch
      %309 = sbr.rel (0) target = $region21
    $region20: #{tpu_custom_call.1} parent=1 // pred_region
      %s311 = ssub.s32 128, 128
      %312 = vsyncadd [#allocation7], %s311
      %s314 = sshll.u32 [#allocation6], 4
      %s315 = int_to_ptr.vmem [resolvable:$true] %s314
      %317 = dma.vmem_to_hbm [thread:$0]  %s315, 128, %s3, [#allocation7]
    $region21: #{tpu_custom_call.1} parent=1 // pred_fallthru
      _
    // Predicated region
    $region22: #{tpu_custom_call.1} parent=1 // pred_check
      _
    $region23: #{tpu_custom_call.1} parent=1 // pred_check_branch
      %319 = sbr.rel (0) target = $region25
    $region24: #{tpu_custom_call.1} parent=1 // pred_region
      _
    $region25: #{tpu_custom_call.1} parent=1 // pred_fallthru
      _
    // Predicated region
    $region26: #{tpu_custom_call.1} parent=1 // pred_check
      _
    $region27: #{tpu_custom_call.1} parent=1 // pred_check_branch
      %321 = sbr.rel (0) target = $region29
    $region28: #{tpu_custom_call.1} parent=1 // pred_region
      %322 = dma.done [#allocation7], 128
    $region29: #{tpu_custom_call.1} parent=1 // pred_fallthru
      _
    // Predicated region
    $region30: #{tpu_custom_call.1} parent=1 // pred_check
      _
    $region31: #{tpu_custom_call.1} parent=1 // pred_check_branch
      %324 = sbr.rel (0) target = $region33
    $region32: #{tpu_custom_call.1} parent=1 // pred_region
      _
    $region33: #{tpu_custom_call.1} parent=1 // pred_fallthru
      _
    %325 = vsyncpa [#allocation7], 1

</llo_original>
